<compile_context>
chip_gen: v5e
topology: v5e:2x2
jax: 0.10.0
libtpu: 0.0.40
codegen_flags: <defaults>
</compile_context>

<pallas_src>
import functools

import jax
import jax.numpy as jnp
from jax.experimental import pallas as pl
from jax.experimental.pallas import tpu as pltpu

# ----------------------------------------------------------------------------
# small demo shapes standing in for (767, 256) -> 2000 -> 512
B = 2
SEQ = 8
VOCAB = 32
DIN = SEQ * VOCAB   # stands in for 767*256 = 196352
H1 = 256            # stands in for 2000 (padded to 2048 at real size)
H2 = 128            # stands in for 512
LN_EPS = 1e-5
VOCAB_IN = 100      # stub backbone token-id vocabulary


def _round_up(x, m):
    return (x + m - 1) // m * m


def _num_tensorcores():
    """2 TensorCores per chip on v7x; 1 on v5e/v6e."""
    kind = ""
    try:
        kind = jax.devices()[0].device_kind.lower()
    except Exception:
        pass
    return 2 if "v7" in kind else 1


def _default_tk():
    """Generation-aware K tile for the w1 stream."""
    kind = ""
    try:
        kind = jax.devices()[0].device_kind.lower()
    except Exception:
        pass
    if "v5 lite" in kind or "v5e" in kind or "v5lite" in kind:
        return 2048   # v5e: ~0.82 TB/s -> per-step overhead already <4%
    return 4096       # v6e/v7x; 2x16 MiB double-buffer fits v7x's 64 MiB VMEM


def _vmem_limit_bytes(working_set_bytes):
    """VMEM budget from the actual working set + headroom (not % of physical)."""
    try:
        cap = pltpu.get_tpu_info().vmem_capacity_bytes
    except Exception:
        cap = 64 << 20
    want = int(working_set_bytes * 3 // 2) + (4 << 20)   # Mosaic scratch headroom
    return max(32 << 20, min(want, cap * 9 // 10))


# ----------------------------------------------------------------------------
# Pallas kernel.  Grid = (NC, NK):
#   axis 0 ("parallel")  : H1 slice per TensorCore
#   axis 1 ("arbitrary") : K reduction over Din, w1 streamed HBM->VMEM
def _head_kernel(x_ref, w1_ref, b1_ref, w2_ref, o_ref, acc_ref, *, tk):
    k = pl.program_id(1)

    @pl.when(k == 0)
    def _init():
        acc_ref[...] = jnp.zeros_like(acc_ref)

    # Linear 1 partial product: resident x sliced along K, bf16 MXU operands,
    # f32 accumulation into VMEM scratch.
    x_tile = x_ref[:, pl.ds(pl.multiple_of(k * tk, 128), tk)]
    acc_ref[...] += jnp.dot(x_tile, w1_ref[...],
                            preferred_element_type=jnp.float32)

    @pl.when(k == pl.num_programs(1) - 1)
    def _finalize():
        # bias1 -> Dropout(0.3) = identity at inference -> ReLU (safe per H1 slice).
        # TODO(synk): training-mode dropout (pltpu.prng_random_bits mask) not emitted.
        h = jnp.maximum(acc_ref[...] + b1_ref[...], 0.0)
        # Partial Linear 2 over this core's H1 slice (matching w2 row slice).
        o_ref[...] = jnp.dot(h.astype(w2_ref.dtype), w2_ref[...],
                             preferred_element_type=jnp.float32)


def text_encoder_head(x_flat, params, cfg):
    """x_flat: (B, DIN) float32 -> (B, H2) float32.  Weights in params are
    pre-padded/pre-cast at init; only the small activation is padded here."""
    bsz, din = x_flat.shape
    assert din == cfg["din"]
    tk, din_pad, h1_pad, nc, h2 = (cfg["tk"], cfg["din_pad"], cfg["h1_pad"],
                                   cfg["nc"], cfg["h2"])
    h1_blk = h1_pad // nc
    nk = din_pad // tk
    b_pad = _round_up(bsz, 8)

    # Zero padding is a mathematical no-op (0-cols of w1 -> relu(0)=0 -> 0-rows of w2).
    x_p = jnp.pad(x_flat.astype(jnp.bfloat16),
                  ((0, b_pad - bsz), (0, din_pad - din)))

    # Actual VMEM working set (resident/invariant operands counted with the
    # default 2 pipeline buffers; w1 keeps default double-buffering on purpose).
    work_set = (2 * b_pad * din_pad * 2        # resident x
                + 2 * tk * h1_blk * 2          # w1 stream double-buffer
                + 2 * h1_blk * 4               # b1
                + 2 * h1_blk * h2 * 2          # w2 (invariant per core slice)
                + 2 * b_pad * h2 * 4           # output block
                + b_pad * h1_blk * 4)          # f32 accumulator scratch

    kernel = functools.partial(_head_kernel, tk=tk)

    partial_y = pl.pallas_call(
        kernel,
        out_shape=jax.ShapeDtypeStruct((nc, b_pad, h2), jnp.float32),
        grid_spec=pltpu.PrefetchScalarGridSpec(
            num_scalar_prefetch=0,
            grid=(nc, nk),
            in_specs=[
                # x: fully VMEM-resident (constant index map -> single fetch),
                # sliced in-kernel along K.
                pl.BlockSpec((b_pad, din_pad), lambda c, k: (0, 0)),
                # w1: streamed along K; column slice c for this core.
                pl.BlockSpec((tk, h1_blk), lambda c, k: (k, c)),
                # b1 / w2: invariant over k (only re-fetched when c changes).
                pl.BlockSpec((1, h1_blk), lambda c, k: (0, c)),
                pl.BlockSpec((h1_blk, h2), lambda c, k: (c, 0)),
            ],
            out_specs=pl.BlockSpec((None, b_pad, h2), lambda c, k: (c, 0, 0)),
            scratch_shapes=[pltpu.VMEM((b_pad, h1_blk), jnp.float32)],
        ),
        compiler_params=pltpu.CompilerParams(
            # H1-split axis shards across TensorCores (2 on v7x); K is a reduction.
            dimension_semantics=("parallel", "arbitrary"),
            vmem_limit_bytes=_vmem_limit_bytes(work_set),
        ),
    )(x_p, params["w1"], params["b1"], params["w2"])

    # Tiny XLA epilogue: cross-core partial sum + bias2 + LayerNorm (~16 KiB).
    # Padded batch rows are dropped BEFORE LayerNorm, so no zero-variance rows.
    y = jnp.sum(partial_y, axis=0)[:bsz] + params["b2"]
    mean = jnp.mean(y, axis=-1, keepdims=True)
    cent = y - mean
    var = jnp.mean(cent * cent, axis=-1, keepdims=True)
    return cent * jax.lax.rsqrt(var + LN_EPS) * params["gamma"] + params["beta"]


# ----------------------------------------------------------------------------
# configuration + parameter init (padding/casting happens ONCE, here)
def make_head_config(*, din=DIN, h1=H1, h2=H2, tk=None, nc=None):
    if nc is None:
        nc = _num_tensorcores()
    if tk is None:
        tk = _default_tk()
    tk = min(_round_up(tk, 128), _round_up(din, 128))
    return dict(din=din, din_pad=_round_up(din, tk),
                h1=h1, h1_pad=_round_up(h1, 128 * nc),
                h2=h2, tk=tk, nc=nc)


def init_params(key, cfg):
    k1, k2, k3, k4, k5 = jax.random.split(key, 5)
    din, din_pad, h1, h1_pad, h2 = (cfg["din"], cfg["din_pad"], cfg["h1"],
                                    cfg["h1_pad"], cfg["h2"])
    s1 = 1.0 / jnp.sqrt(din)
    s2 = 1.0 / jnp.sqrt(h1)
    w1 = jax.random.uniform(k1, (din, h1), jnp.float32, -s1, s1)
    b1 = jax.random.uniform(k2, (1, h1), jnp.float32, -s1, s1)
    w2 = jax.random.uniform(k3, (h1, h2), jnp.float32, -s2, s2)
    b2 = jax.random.uniform(k4, (1, h2), jnp.float32, -s2, s2)
    return {
        "emb": jax.random.normal(k5, (VOCAB_IN, VOCAB), jnp.float32) * 0.02,
        # Pre-padded + pre-cast bf16: passed straight to pallas_call each call.
        "w1": jnp.pad(w1.astype(jnp.bfloat16),
                      ((0, din_pad - din), (0, h1_pad - h1))),
        "b1": jnp.pad(b1, ((0, 0), (0, h1_pad - h1))),
        "w2": jnp.pad(w2.astype(jnp.bfloat16), ((0, h1_pad - h1), (0, 0))),
        "b2": b2,
        "gamma": jnp.ones((1, h2), jnp.float32),
        "beta": jnp.zeros((1, h2), jnp.float32),
    }


def stub_backbone(params, input_ids, attention_mask):
    # TODO(synk): the real frozen pretrained `self.model` cannot be translated;
    # this deterministic embedding lookup stands in for `model(...).logits`.
    logits = params["emb"][input_ids]                        # (B, SEQ, VOCAB)
    return logits * attention_mask[..., None].astype(jnp.float32)


def forward(params, cfg, input_ids, attention_mask):
    logits = stub_backbone(params, input_ids, attention_mask)   # (B, SEQ, VOCAB)
    x_flat = logits.reshape(logits.shape[0], -1)                # nn.Flatten()
    return text_encoder_head(x_flat, params, cfg)


def forward_ref(params, cfg, input_ids, attention_mask):
    # pure-JAX reference with the same bf16-in / f32-accumulate numerics
    din, h1 = cfg["din"], cfg["h1"]
    w1 = params["w1"][:din, :h1]
    b1 = params["b1"][:, :h1]
    w2 = params["w2"][:h1, :]
    logits = stub_backbone(params, input_ids, attention_mask)
    x = logits.reshape(logits.shape[0], -1).astype(jnp.bfloat16)
    h = jnp.dot(x, w1, preferred_element_type=jnp.float32) + b1
    h = jnp.maximum(h, 0.0)
    y = jnp.dot(h.astype(jnp.bfloat16), w2,
                preferred_element_type=jnp.float32) + params["b2"]
    mean = jnp.mean(y, axis=-1, keepdims=True)
    var = jnp.mean((y - mean) ** 2, axis=-1, keepdims=True)
    return (y - mean) * jax.lax.rsqrt(var + LN_EPS) * params["gamma"] + params["beta"]


if __name__ == "__main__":
    key = jax.random.PRNGKey(0)
    kp, ki = jax.random.split(key)

    # Demo config: tk=128 forces a multi-step K reduction; nc=2 exercises the
    # dual-TensorCore H1-split code path even on single-core chips (where the
    # "parallel" axis is just a sequential loop and remains correct).
    cfg = make_head_config(tk=128, nc=2)
    params = init_params(kp, cfg)

    input_ids = jax.random.randint(ki, (B, SEQ), 0, VOCAB_IN, dtype=jnp.int32)
    attention_mask = jnp.ones((B, SEQ), dtype=jnp.int32)

    out = forward(params, cfg, input_ids, attention_mask)
    out = jax.block_until_ready(out)

    ref = forward_ref(params, cfg, input_ids, attention_mask)
    assert out.shape == (B, H2), out.shape
    assert jnp.allclose(out, ref, atol=2e-3, rtol=2e-3), "mismatch vs JAX reference"

    print("KERNEL_OK")
</pallas_src>

<mosaic_0001>
module attributes {stable_mosaic.version = 11 : i64} {
  func.func @_head_kernel(%arg0: i32, %arg1: i32, %arg2: memref<8x256xbf16, #tpu.memory_space<vmem>>, %arg3: memref<128x128xbf16, #tpu.memory_space<vmem>>, %arg4: memref<1x128xf32, #tpu.memory_space<vmem>>, %arg5: memref<128x128xbf16, #tpu.memory_space<vmem>>, %arg6: memref<1x8x128xf32, #tpu.memory_space<vmem>>, %arg7: memref<8x128xf32, #tpu.memory_space<vmem>>) attributes {dimension_semantics = [#tpu.dimension_semantics<parallel>, #tpu.dimension_semantics<arbitrary>], iteration_bounds = array<i64: 2, 2>, scalar_prefetch = 0 : i64, scratch_operands = 1 : i64, tpu.core_type = #tpu.core_type<tc>, window_params = [{pipeline_mode = #tpu.pipeline_mode<synchronous>, transform_indices = @transform_0, window_bounds = array<i64: 8, 256>}, {transform_indices = @transform_1, window_bounds = array<i64: 128, 128>}, {transform_indices = @transform_2, window_bounds = array<i64: 1, 128>}, {transform_indices = @transform_3, window_bounds = array<i64: 128, 128>}, {transform_indices = @transform_4, window_bounds = array<i64: 1, 8, 128>}]} {
    %c0_i32 = arith.constant 0 : i32
    %0 = arith.cmpi eq, %arg1, %c0_i32 : i32
    %1 = arith.extui %0 : i1 to i32
    %c0_i32_0 = arith.constant 0 : i32
    %2 = arith.cmpi ne, %1, %c0_i32_0 : i32
    scf.if %2 {
      %cst_8 = arith.constant 0.000000e+00 : f32
      %15 = vector.broadcast %cst_8 : f32 to vector<8x128xf32>
      %c0_9 = arith.constant 0 : index
      %c0_10 = arith.constant 0 : index
      %16 = vector.load %arg7[%c0_9, %c0_10] : memref<8x128xf32, #tpu.memory_space<vmem>>, vector<8x128xf32>
      tpu.vector_store %arg7[%c0_9, %c0_10], %15 {strides = array<i32>} : memref<8x128xf32, #tpu.memory_space<vmem>>, vector<8x128xf32>,
    } else {
    }
    %c128_i32 = arith.constant 128 : i32
    %3 = arith.muli %arg1, %c128_i32 : i32
    %4 = tpu.assume_multiple %3, 128 : i32
    %c0 = arith.constant 0 : index
    %5 = arith.index_cast %4 : i32 to index
    %6 = vector.load %arg2[%c0, %5] : memref<8x256xbf16, #tpu.memory_space<vmem>>, vector<8x128xbf16>
    %c0_1 = arith.constant 0 : index
    %c0_2 = arith.constant 0 : index
    %7 = vector.load %arg7[%c0_1, %c0_2] : memref<8x128xf32, #tpu.memory_space<vmem>>, vector<8x128xf32>
    %c0_3 = arith.constant 0 : index
    %c0_4 = arith.constant 0 : index
    %8 = vector.load %arg3[%c0_3, %c0_4] : memref<128x128xbf16, #tpu.memory_space<vmem>>, vector<128x128xbf16>
    %cst = arith.constant dense<0.000000e+00> : vector<8x128xf32>
    %9 = tpu.matmul %6, %8, %cst {dimension_numbers = #tpu.dot_dimension_numbers<[1], [0], [0], [1], [0, 0, 1, 1], [], []>} : vector<8x128xbf16>, vector<128x128xbf16>, vector<8x128xf32> -> vector<8x128xf32>
    %10 = arith.addf %7, %9 : vector<8x128xf32>
    %c0_5 = arith.constant 0 : index
    %c0_6 = arith.constant 0 : index
    %11 = vector.load %arg7[%c0_5, %c0_6] : memref<8x128xf32, #tpu.memory_space<vmem>>, vector<8x128xf32>
    tpu.vector_store %arg7[%c0_5, %c0_6], %10 {strides = array<i32>} : memref<8x128xf32, #tpu.memory_space<vmem>>, vector<8x128xf32>,
    %c1_i32 = arith.constant 1 : i32
    %12 = arith.cmpi eq, %arg1, %c1_i32 : i32
    %13 = arith.extui %12 : i1 to i32
    %c0_i32_7 = arith.constant 0 : i32
    %14 = arith.cmpi ne, %13, %c0_i32_7 : i32
    scf.if %14 {
      %c0_8 = arith.constant 0 : index
      %c0_9 = arith.constant 0 : index
      %15 = vector.load %arg7[%c0_8, %c0_9] : memref<8x128xf32, #tpu.memory_space<vmem>>, vector<8x128xf32>
      %c0_10 = arith.constant 0 : index
      %c0_11 = arith.constant 0 : index
      %16 = vector.load %arg4[%c0_10, %c0_11] : memref<1x128xf32, #tpu.memory_space<vmem>>, vector<1x128xf32>
      %17 = vector.broadcast %16 : vector<1x128xf32> to vector<8x128xf32>
      %18 = arith.addf %15, %17 : vector<8x128xf32>
      %cst_12 = arith.constant 0.000000e+00 : f32
      %19 = vector.broadcast %cst_12 : f32 to vector<8x128xf32>
      %20 = arith.maximumf %18, %19 : vector<8x128xf32>
      %21 = arith.truncf %20 : vector<8x128xf32> to vector<8x128xbf16>
      %c0_13 = arith.constant 0 : index
      %c0_14 = arith.constant 0 : index
      %22 = vector.load %arg5[%c0_13, %c0_14] : memref<128x128xbf16, #tpu.memory_space<vmem>>, vector<128x128xbf16>
      %cst_15 = arith.constant dense<0.000000e+00> : vector<8x128xf32>
      %23 = tpu.matmul %21, %22, %cst_15 {dimension_numbers = #tpu.dot_dimension_numbers<[1], [0], [0], [1], [0, 0, 1, 1], [], []>} : vector<8x128xbf16>, vector<128x128xbf16>, vector<8x128xf32> -> vector<8x128xf32>
      %c0_16 = arith.constant 0 : index
      %c0_17 = arith.constant 0 : index
      %c0_18 = arith.constant 0 : index
      %24 = vector.load %arg6[%c0_16, %c0_17, %c0_18] : memref<1x8x128xf32, #tpu.memory_space<vmem>>, vector<1x8x128xf32>
      %25 = vector.shape_cast %24 : vector<1x8x128xf32> to vector<8x128xf32>
      %26 = vector.shape_cast %23 : vector<8x128xf32> to vector<1x8x128xf32>
      tpu.vector_store %arg6[%c0_16, %c0_17, %c0_18], %26 {strides = array<i32>} : memref<1x8x128xf32, #tpu.memory_space<vmem>>, vector<1x8x128xf32>,
    } else {
    }
    return
  }
  func.func @transform_0(%arg0: i32, %arg1: i32) -> (i32, i32) {
    %c0_i32 = arith.constant 0 : i32
    %c0_i32_0 = arith.constant 0 : i32
    %c0_i32_1 = arith.constant 0 : i32
    return %c0_i32, %c0_i32_0 : i32, i32
  }
  func.func @transform_1(%arg0: i32, %arg1: i32) -> (i32, i32) {
    %c0_i32 = arith.constant 0 : i32
    return %arg1, %arg0 : i32, i32
  }
  func.func @transform_2(%arg0: i32, %arg1: i32) -> (i32, i32) {
    %c0_i32 = arith.constant 0 : i32
    %c0_i32_0 = arith.constant 0 : i32
    return %c0_i32, %arg0 : i32, i32
  }
  func.func @transform_3(%arg0: i32, %arg1: i32) -> (i32, i32) {
    %c0_i32 = arith.constant 0 : i32
    %c0_i32_0 = arith.constant 0 : i32
    return %arg0, %c0_i32 : i32, i32
  }
  func.func @transform_4(%arg0: i32, %arg1: i32) -> (i32, i32, i32) {
    %c0_i32 = arith.constant 0 : i32
    %c0_i32_0 = arith.constant 0 : i32
    %c0_i32_1 = arith.constant 0 : i32
    return %arg0, %c0_i32, %c0_i32_0 : i32, i32, i32
  }
}

</mosaic_0001>

<llo_original>
// kernel: tpu_custom_call.1
$region0: #{tpu_custom_call.1}
  #allocation0 [shape = 'u32[]', space=smem, size = 0x4, offset = 0x4, fixed_abs, tag = 'smem constant byte address 0x4 - core index']
  #allocation1 [shape = 'u32[72,128]{1,0:T(1,128)}', space=vmem, size = 0x9000, scoped, tag = 'internal scratch']
  #allocation2 [shape = 'f32[8,128]{1,0:T(8,128)}', space=vmem, size = 0x1000, scoped, tag = 'scratch operand']
  %s0 = inlined_call_operand.hbm [shape: bf16[8,256], index: 0, kind: input, shape index: {}]
  %s1 = inlined_call_operand.hbm [shape: bf16[256,256], index: 1, kind: input, shape index: {}]
  %s2 = inlined_call_operand.hbm [shape: f32[1,256], index: 2, kind: input, shape index: {}]
  %s3 = inlined_call_operand.hbm [shape: bf16[256,128], index: 3, kind: input, shape index: {}]
  %s4 = inlined_call_operand.hbm [shape: f32[2,8,128], index: 4, kind: output, shape index: {}]
  %s5 = sld [smem:[#allocation0]]
  $region73: #{tpu_custom_call.1} parent=0
    _
  %s7 = ssub.s32 1, %s5
  %s8 = scalar_select 0, %s7, %s5
  $region1: #{tpu_custom_call.1} parent=0
    #allocation3 [shape = 'u8[4096]{0}', space=vmem, size = 0x1000, scoped, tag = 'input window, operand 0, single buffered']
    #allocation4 [shape = 's32[2]{0}', space=sflag, size = 0x8, scoped, tag = 'scoped memory for tpu_custom_call.1']
    #allocation5 [shape = 's32[2]{0}', space=sflag, size = 0x8, scoped, tag = 'scoped memory for tpu_custom_call.1']
    #allocation6 [shape = 'u8[65536]{0}', space=vmem, size = 0x10000, scoped, tag = 'input window, operand 1']
    #allocation7 [shape = 's32[2]{0}', space=sflag, size = 0x8, scoped, tag = 'scoped memory for tpu_custom_call.1']
    #allocation8 [shape = 'u8[1024]{0}', space=vmem, size = 0x400, scoped, tag = 'input window, operand 2']
    #allocation9 [shape = 'u8[65536]{0}', space=vmem, size = 0x10000, scoped, tag = 'input window, operand 3']
    #allocation10 [shape = 's32[2]{0}', space=sflag, size = 0x8, scoped, tag = 'scoped memory for tpu_custom_call.1']
    #allocation11 [shape = 'u8[8192]{0}', space=vmem, size = 0x2000, scoped, tag = 'output window, operand 0']
    %9 = vsyncpa [#allocation4], 0
    %10 = vsyncpa [#allocation7], 0
    %s11 = scalar_lea.sflag [#allocation7], 1
    %12 = vsyncpa %s11, 0
    %13 = vsyncpa [#allocation10], 0
    %s14 = scalar_lea.sflag [#allocation10], 1
    %15 = vsyncpa %s14, 0
    %16 = vsyncpa [#allocation5], 0
    %s17 = scalar_lea.sflag [#allocation5], 1
    %18 = vsyncpa %s17, 0
    loop: start=0, step=1, limit=6
    $region2: #{tpu_custom_call.1} parent=1 // loop_pre_header
      _
    $region3: #{tpu_custom_call.1} parent=1 // loop_header
      %s20 = sphi 0, %s24
      %p21 = scmp.ge.s32.totalorder %s20, 6
      %s27 = sphi 0, %s39
      %s28 = sphi 0, %s35
      %s29 = sphi 0, %s27
      %s30 = sphi 0, %s28
      %s31 = sphi 0, %s29
      %s32 = sphi 0, %s30
      %s40 = sphi 0, %s40
      %s42 = sphi 0, %s40
      %s43 = sphi 0, %s42
      %s57 = sphi 0, %s43
      %s65 = sphi 0, %s67
      %s68 = sphi 0, %s65
      %s69 = sphi 0, %s68
      %s85 = sphi 0, %s69
      %s91 = sphi 0, %s93
      %s94 = sphi 0, %s91
      %s95 = sphi 0, %s94
      %s111 = sphi 0, %s95
      %s117 = sphi 0, %s119
      %s120 = sphi 0, %s117
      %s121 = sphi 0, %s120
      %s137 = sphi 0, %s121
      %s143 = sphi 0, %s145
      %s146 = sphi 0, %s143
      %s147 = sphi 0, %s146
      %s163 = sphi 0, %s147
    $region4: #{tpu_custom_call.1} parent=1 // loop_header_branch
      %23 = sbr.rel (%p21) target = $region8
    $region5: #{tpu_custom_call.1} parent=1 // loop_body
      %s25 = ssub.s32 %s20, 1
      %s26 = ssub.s32 %s20, 2
      %s33 = sadd.s32 1, %s28
      %p34 = scmp.ge.s32.totalorder %s33, 2
      %s35 = scalar_select %p34, 0, %s33
      %s36 = sadd.s32 1, %s27
      %s37 = scalar_select %p34, %s36, %s27
      %p38 = scmp.ge.s32.totalorder %s37, 2
      %s39 = scalar_select %p38, 0, %s37
      %s41 = sadd.s32 %s40, 1
      %p44 = scmp.eq.s32.totalorder %s20, 3
      %p45 = scmp.ne.s32.totalorder %s40, %s42
      %p46 = scmp.eq.s32.totalorder %s20, 0
      %p47 = por %p45, %p46
      %p48 = scmp.ne.s32.totalorder %s40, %s42
      %p49 = scmp.eq.s32.totalorder %s25, 3
      %p50 = por %p48, %p49
      %p51 = scmp.ne.s32.totalorder %s42, %s43
      %p52 = scmp.eq.s32.totalorder %s25, 0
      %p53 = por %p51, %p52
      %p54 = scmp.ne.s32.totalorder %s42, %s43
      %p55 = scmp.eq.s32.totalorder %s26, 3
      %p56 = por %p54, %p55
      %p58 = scmp.ne.s32.totalorder %s43, %s57
      %p59 = scmp.eq.s32.totalorder %s26, 0
      %p60 = por %p58, %p59
      %s61 = ssub.s32 %s28, %s35
      %s62 = ssub.s32 %s27, %s39
      %s63 = sor.u32 %s61, %s62
      %p64 = scmp.eq.s32.totalorder %s63, 0
      %s66 = sadd.s32 %s65, 1
      %s67 = scalar_select %p64, %s65, %s66
      %p70 = pneg %p64
      %p71 = scmp.eq.s32.totalorder %s20, 3
      %p72 = por %p70, %p71
      %p73 = scmp.ne.s32.totalorder %s65, %s68
      %p74 = scmp.eq.s32.totalorder %s20, 0
      %p75 = por %p73, %p74
      %p76 = scmp.ne.s32.totalorder %s65, %s68
      %p77 = scmp.eq.s32.totalorder %s25, 3
      %p78 = por %p76, %p77
      %p79 = scmp.ne.s32.totalorder %s68, %s69
      %p80 = scmp.eq.s32.totalorder %s25, 0
      %p81 = por %p79, %p80
      %p82 = scmp.ne.s32.totalorder %s68, %s69
      %p83 = scmp.eq.s32.totalorder %s26, 3
      %p84 = por %p82, %p83
      %p86 = scmp.ne.s32.totalorder %s69, %s85
      %p87 = scmp.eq.s32.totalorder %s26, 0
      %p88 = por %p86, %p87
      %s89 = ssub.s32 %s27, %s39
      %p90 = scmp.eq.s32.totalorder %s89, 0
      %s92 = sadd.s32 %s91, 1
      %s93 = scalar_select %p90, %s91, %s92
      %p96 = pneg %p90
      %p97 = scmp.eq.s32.totalorder %s20, 3
      %p98 = por %p96, %p97
      %p99 = scmp.ne.s32.totalorder %s91, %s94
      %p100 = scmp.eq.s32.totalorder %s20, 0
      %p101 = por %p99, %p100
      %p102 = scmp.ne.s32.totalorder %s91, %s94
      %p103 = scmp.eq.s32.totalorder %s25, 3
      %p104 = por %p102, %p103
      %p105 = scmp.ne.s32.totalorder %s94, %s95
      %p106 = scmp.eq.s32.totalorder %s25, 0
      %p107 = por %p105, %p106
      %p108 = scmp.ne.s32.totalorder %s94, %s95
      %p109 = scmp.eq.s32.totalorder %s26, 3
      %p110 = por %p108, %p109
      %p112 = scmp.ne.s32.totalorder %s95, %s111
      %p113 = scmp.eq.s32.totalorder %s26, 0
      %p114 = por %p112, %p113
      %s115 = ssub.s32 %s27, %s39
      %p116 = scmp.eq.s32.totalorder %s115, 0
      %s118 = sadd.s32 %s117, 1
      %s119 = scalar_select %p116, %s117, %s118
      %p122 = pneg %p116
      %p123 = scmp.eq.s32.totalorder %s20, 3
      %p124 = por %p122, %p123
      %p125 = scmp.ne.s32.totalorder %s117, %s120
      %p126 = scmp.eq.s32.totalorder %s20, 0
      %p127 = por %p125, %p126
      %p128 = scmp.ne.s32.totalorder %s117, %s120
      %p129 = scmp.eq.s32.totalorder %s25, 3
      %p130 = por %p128, %p129
      %p131 = scmp.ne.s32.totalorder %s120, %s121
      %p132 = scmp.eq.s32.totalorder %s25, 0
      %p133 = por %p131, %p132
      %p134 = scmp.ne.s32.totalorder %s120, %s121
      %p135 = scmp.eq.s32.totalorder %s26, 3
      %p136 = por %p134, %p135
      %p138 = scmp.ne.s32.totalorder %s121, %s137
      %p139 = scmp.eq.s32.totalorder %s26, 0
      %p140 = por %p138, %p139
      %s141 = ssub.s32 %s27, %s39
      %p142 = scmp.eq.s32.totalorder %s141, 0
      %s144 = sadd.s32 %s143, 1
      %s145 = scalar_select %p142, %s143, %s144
      %p148 = pneg %p142
      %p149 = scmp.eq.s32.totalorder %s20, 3
      %p150 = por %p148, %p149
      %p151 = scmp.ne.s32.totalorder %s143, %s146
      %p152 = scmp.eq.s32.totalorder %s20, 0
      %p153 = por %p151, %p152
      %p154 = scmp.ne.s32.totalorder %s143, %s146
      %p155 = scmp.eq.s32.totalorder %s25, 3
      %p156 = por %p154, %p155
      %p157 = scmp.ne.s32.totalorder %s146, %s147
      %p158 = scmp.eq.s32.totalorder %s25, 0
      %p159 = por %p157, %p158
      %p160 = scmp.ne.s32.totalorder %s146, %s147
      %p161 = scmp.eq.s32.totalorder %s26, 3
      %p162 = por %p160, %p161
      %p164 = scmp.ne.s32.totalorder %s147, %s163
      %p165 = scmp.eq.s32.totalorder %s26, 0
      %p166 = por %p164, %p165
      %p167 = scmp.le.s32.totalorder 1, %s20
      %p168 = scmp.lt.s32.totalorder %s20, 5
      %p169 = pnand %p167, %p168
      %p170 = pneg %p169
      // Predicated region
      $region9: #{tpu_custom_call.1} parent=5 // pred_check
        _
      $region10: #{tpu_custom_call.1} parent=5 // pred_check_branch
        %172 = sbr.rel (%p169) target = $region12
      $region11: #{tpu_custom_call.1} parent=5 // pred_region
        %s173 = ssub.s32 %s20, 1
        // Predicated region
        $region13: #{tpu_custom_call.1} parent=11 // pred_check
          %p174 = pneg %p53
        $region14: #{tpu_custom_call.1} parent=11 // pred_check_branch
          %176 = sbr.rel (%p174) target = $region16
        $region15: #{tpu_custom_call.1} parent=11 // pred_region
          %178 = vsyncadd [#allocation4], 0
          %s180 = sshll.u32 %s0, 4
          %s181 = int_to_ptr.hbm [resolvable:$true] %s180
          %s182 = sshll.u32 [#allocation3], 4
          %s183 = int_to_ptr.vmem [resolvable:$true] %s182
          %185 = dma.hbm_to_vmem [thread:$0]  %s181, 128, %s183, [#allocation4]
        $region16: #{tpu_custom_call.1} parent=11 // pred_fallthru
          _
      $region12: #{tpu_custom_call.1} parent=5 // pred_fallthru
        _
      %p186 = scmp.lt.s32.totalorder %s20, 4
      // Predicated region
      $region17: #{tpu_custom_call.1} parent=5 // pred_check
        %p187 = pneg %p186
      $region18: #{tpu_custom_call.1} parent=5 // pred_check_branch
        %189 = sbr.rel (%p187) target = $region20
      $region19: #{tpu_custom_call.1} parent=5 // pred_region
        // Predicated region
        $region21: #{tpu_custom_call.1} parent=19 // pred_check
          %p190 = pneg %p75
        $region22: #{tpu_custom_call.1} parent=19 // pred_check_branch
          %192 = sbr.rel (%p190) target = $region24
        $region23: #{tpu_custom_call.1} parent=19 // pred_region
          %s193 = sand.u32 %s20, 1
          %s194 = scalar_lea.sflag [#allocation7], %s193
          %s195 = sand.u32 %s65, 1
          %s196 = smul.addr %s195, 64
          %s197 = scalar_lea.vmem [#allocation6], %s196
          %s198 = smul.u32 16, %s28
          %200 = vsyncadd %s194, 0
          %s201 = smul.addr %s198, 2
          %s202 = sadd.s32 %s27, %s201
          %s203 = smul.addr %s202, 4
          %s204 = scalar_lea.hbm %s1, %s203
          %s205 = sshll.u32 %s204, 4
          %s206 = int_to_ptr.hbm [resolvable:$true] %s205
          %s207 = sshll.u32 %s197, 4
          %s208 = int_to_ptr.vmem [resolvable:$true] %s207
          %213 = dma.hbm_to_vmem [thread:$0]  %s206, 1024, %s208, %s194, 128, 64, 4
        $region24: #{tpu_custom_call.1} parent=19 // pred_fallthru
          _
        // Predicated region
        $region25: #{tpu_custom_call.1} parent=19 // pred_check
          %p214 = pneg %p101
        $region26: #{tpu_custom_call.1} parent=19 // pred_check_branch
          %216 = sbr.rel (%p214) target = $region28
        $region27: #{tpu_custom_call.1} parent=19 // pred_region
          %s217 = sand.u32 %s20, 1
          %s218 = scalar_lea.sflag [#allocation7], %s217
          %s219 = sand.u32 %s91, 1
          %s220 = scalar_lea.vmem [#allocation8], %s219
          %222 = vsyncadd %s218, 0
          %s223 = scalar_lea.hbm %s2, %s27
          %s225 = sshll.u32 %s223, 4
          %s226 = int_to_ptr.hbm [resolvable:$true] %s225
          %s227 = sshll.u32 %s220, 4
          %s228 = int_to_ptr.vmem [resolvable:$true] %s227
          %230 = dma.hbm_to_vmem [thread:$0]  %s226, 16, %s228, %s218
        $region28: #{tpu_custom_call.1} parent=19 // pred_fallthru
          _
        // Predicated region
        $region29: #{tpu_custom_call.1} parent=19 // pred_check
          %p231 = pneg %p127
        $region30: #{tpu_custom_call.1} parent=19 // pred_check_branch
          %233 = sbr.rel (%p231) target = $region32
        $region31: #{tpu_custom_call.1} parent=19 // pred_region
          %s234 = sand.u32 %s117, 1
          %s235 = scalar_lea.sflag [#allocation10], %s234
          %s236 = sand.u32 %s117, 1
          %s237 = smul.addr %s236, 64
          %s238 = scalar_lea.vmem [#allocation9], %s237
          %s239 = smul.u32 16, %s27
          %241 = vsyncadd %s235, 0
          %s242 = smul.addr %s239, 4
          %s243 = scalar_lea.hbm %s3, %s242
          %s244 = sshll.u32 %s243, 4
          %s245 = int_to_ptr.hbm [resolvable:$true] %s244
          %s246 = sshll.u32 %s238, 4
          %s247 = int_to_ptr.vmem [resolvable:$true] %s246
          %252 = dma.hbm_to_vmem [thread:$0]  %s245, 1024, %s247, %s235, 64, 64, 4
        $region32: #{tpu_custom_call.1} parent=19 // pred_fallthru
          _
      $region20: #{tpu_custom_call.1} parent=5 // pred_fallthru
        _
      %p253 = scmp.le.s32.totalorder 1, %s20
      %p254 = scmp.lt.s32.totalorder %s20, 5
      %p255 = pnand %p253, %p254
      %p256 = pneg %p255
      // Predicated region
      $region33: #{tpu_custom_call.1} parent=5 // pred_check
        _
      $region34: #{tpu_custom_call.1} parent=5 // pred_check_branch
        %258 = sbr.rel (%p255) target = $region36
      $region35: #{tpu_custom_call.1} parent=5 // pred_region
        %s259 = ssub.s32 %s20, 1
        // Predicated region
        $region37: #{tpu_custom_call.1} parent=35 // pred_check
          %p260 = pneg %p53
        $region38: #{tpu_custom_call.1} parent=35 // pred_check_branch
          %262 = sbr.rel (%p260) target = $region40
        $region39: #{tpu_custom_call.1} parent=35 // pred_region
          %264 = dma.done [#allocation4], 128
        $region40: #{tpu_custom_call.1} parent=35 // pred_fallthru
          _
        %s265 = sand.u32 %s25, 1
        %s266 = scalar_lea.sflag [#allocation7], %s265
        %s267 = sand.u32 %s68, 1
        %s268 = smul.addr %s267, 64
        %s269 = scalar_lea.vmem [#allocation6], %s268
        // Predicated region
        $region41: #{tpu_custom_call.1} parent=35 // pred_check
          %p270 = pneg %p81
        $region42: #{tpu_custom_call.1} parent=35 // pred_check_branch
          %272 = sbr.rel (%p270) target = $region44
        $region43: #{tpu_custom_call.1} parent=35 // pred_region
          %274 = dma.done %s266, 1024
        $region44: #{tpu_custom_call.1} parent=35 // pred_fallthru
          _
        %s275 = sand.u32 %s25, 1
        %s276 = scalar_lea.sflag [#allocation7], %s275
        %s277 = sand.u32 %s94, 1
        %s278 = scalar_lea.vmem [#allocation8], %s277
        // Predicated region
        $region45: #{tpu_custom_call.1} parent=35 // pred_check
          %p279 = pneg %p107
        $region46: #{tpu_custom_call.1} parent=35 // pred_check_branch
          %281 = sbr.rel (%p279) target = $region48
        $region47: #{tpu_custom_call.1} parent=35 // pred_region
          %283 = dma.done %s276, 16
        $region48: #{tpu_custom_call.1} parent=35 // pred_fallthru
          _
        %s284 = sand.u32 %s120, 1
        %s285 = scalar_lea.sflag [#allocation10], %s284
        %s286 = sand.u32 %s120, 1
        %s287 = smul.addr %s286, 64
        %s288 = scalar_lea.vmem [#allocation9], %s287
        // Predicated region
        $region49: #{tpu_custom_call.1} parent=35 // pred_check
          %p289 = pneg %p133
        $region50: #{tpu_custom_call.1} parent=35 // pred_check_branch
          %291 = sbr.rel (%p289) target = $region52
        $region51: #{tpu_custom_call.1} parent=35 // pred_region
          %293 = dma.done %s285, 1024
        $region52: #{tpu_custom_call.1} parent=35 // pred_fallthru
          _
        %p294 = pneg %p53
        %p295 = pneg %p50
        %s296 = sand.u32 %s25, 1
        %s297 = scalar_lea.sflag [#allocation7], %s296
        %s298 = sand.u32 %s68, 1
        %s299 = smul.addr %s298, 64
        %s300 = scalar_lea.vmem [#allocation6], %s299
        %p301 = pneg %p81
        %p302 = pneg %p78
        %s303 = sand.u32 %s25, 1
        %s304 = scalar_lea.sflag [#allocation7], %s303
        %s305 = sand.u32 %s94, 1
        %s306 = scalar_lea.vmem [#allocation8], %s305
        %p307 = pneg %p107
        %p308 = pneg %p104
        %s309 = sand.u32 %s120, 1
        %s310 = scalar_lea.sflag [#allocation10], %s309
        %s311 = sand.u32 %s120, 1
        %s312 = smul.addr %s311, 64
        %s313 = scalar_lea.vmem [#allocation9], %s312
        %p314 = pneg %p133
        %p315 = pneg %p130
        %p316 = pneg %p159
        %p317 = pneg %p156
        %s318 = sand.u32 %s146, 1
        %s319 = scalar_lea.sflag [#allocation5], %s318
        %s320 = sand.u32 %s146, 1
        %s321 = smul.addr %s320, 8
        %s322 = scalar_lea.vmem [#allocation11], %s321
        %s323 = smul.u32 16, %s30
        %s324 = smul.u32 16, %s29
        %p325 = scmp.eq.s32.totalorder %s30, 0
        // Predicated region
        $region53: #{tpu_custom_call.1} parent=35 // pred_check
          %p326 = pneg %p325
        $region54: #{tpu_custom_call.1} parent=35 // pred_check_branch
          %328 = sbr.rel (%p326) target = $region56
        $region55: #{tpu_custom_call.1} parent=35 // pred_region
          %329 = vst [vmem:[#allocation2] sm:$0xff] 0.0
        $region56: #{tpu_custom_call.1} parent=35 // pred_fallthru
          _
        %s330 = smul.u32 %s30, 128
        %s331 = sshra.s32 %s330, 7
        %s332 = sand.u32 %s330, 127
        %s333 = smul.addr %s331, 4
        %s334 = scalar_lea.vmem [#allocation3], %s333
        %v335 = vld [vmem:[%s334] sm:$0xf]
        %v336 = vld [vmem:[#allocation2] sm:$0xff]
        %v337 = vld [vmem:[%s269] sm:$0xf]
        %v338 = vld [vmem:[%s269 + $0x4] sm:$0xf]
        %v339 = vld [vmem:[%s269 + $0x8] sm:$0xf]
        %v340 = vld [vmem:[%s269 + $0xc] sm:$0xf]
        %v341 = vld [vmem:[%s269 + $0x10] sm:$0xf]
        %v342 = vld [vmem:[%s269 + $0x14] sm:$0xf]
        %v343 = vld [vmem:[%s269 + $0x18] sm:$0xf]
        %v344 = vld [vmem:[%s269 + $0x1c] sm:$0xf]
        %v345 = vld [vmem:[%s269 + $0x20] sm:$0xf]
        %v346 = vld [vmem:[%s269 + $0x24] sm:$0xf]
        %v347 = vld [vmem:[%s269 + $0x28] sm:$0xf]
        %v348 = vld [vmem:[%s269 + $0x2c] sm:$0xf]
        %v349 = vld [vmem:[%s269 + $0x30] sm:$0xf]
        %v350 = vld [vmem:[%s269 + $0x34] sm:$0xf]
        %v351 = vld [vmem:[%s269 + $0x38] sm:$0xf]
        %v352 = vld [vmem:[%s269 + $0x3c] sm:$0xf]
        %v369 = vunpack.c.l.b16 %v337
        %v370 = vunpack.c.l.b16 %v338
        %v371 = vunpack.c.l.b16 %v339
        %v372 = vunpack.c.l.b16 %v340
        %v373 = vunpack.c.l.b16 %v341
        %v374 = vunpack.c.l.b16 %v342
        %v375 = vunpack.c.l.b16 %v343
        %v376 = vunpack.c.l.b16 %v344
        %v377 = vunpack.c.l.b16 %v345
        %v378 = vunpack.c.l.b16 %v346
        %v379 = vunpack.c.l.b16 %v347
        %v380 = vunpack.c.l.b16 %v348
        %v381 = vunpack.c.l.b16 %v349
        %v382 = vunpack.c.l.b16 %v350
        %v383 = vunpack.c.l.b16 %v351
        %v384 = vunpack.c.l.b16 %v352
        %v385 = vpack.c.b16 %v370, %v369
        %v386 = vpack.c.b16 %v372, %v371
        %v387 = vpack.c.b16 %v374, %v373
        %v388 = vpack.c.b16 %v376, %v375
        %v389 = vpack.c.b16 %v378, %v377
        %v390 = vpack.c.b16 %v380, %v379
        %v391 = vpack.c.b16 %v382, %v381
        %v392 = vpack.c.b16 %v384, %v383
        %401 = vmatpush.bf16.msra.mxu0 %v392
        %402 = vmatpush.bf16.msra.mxu0 %v391
        %403 = vmatpush.bf16.msra.mxu0 %v390
        %404 = vmatpush.bf16.msra.mxu0 %v389
        %405 = vmatpush.bf16.msra.mxu0 %v388
        %406 = vmatpush.bf16.msra.mxu0 %v387
        %407 = vmatpush.bf16.msra.mxu0 %v386
        %408 = vmatpush.bf16.msra.mxu0 %v385
        %409 = vmatmul.bf16.gmra.mxu0 %v335
        %v410 = vpop.f32.mrf.mxu0
        %v411 = vadd.f32 0.0, %v410
        %v412 = vpop.f32.mrf.mxu0
        %413 = vdwg.mxu0
        %v414 = vadd.f32 %v336, %v411
        %415 = vst [vmem:[#allocation2] sm:$0xff] %v414
        %p416 = scmp.eq.s32.totalorder %s30, 1
        // Predicated region
        $region57: #{tpu_custom_call.1} parent=35 // pred_check
          %p417 = pneg %p416
        $region58: #{tpu_custom_call.1} parent=35 // pred_check_branch
          %419 = sbr.rel (%p417) target = $region60
        $region59: #{tpu_custom_call.1} parent=35 // pred_region
          %v420 = vld [vmem:[#allocation2] sm:$0xff]
          %v421 = vld [vmem:[%s278] sm:$0x1]
          %v423 = vperm.slane %v421, 0
          %v425 = vadd.f32 %v420, %v423
          %v426 = vmax.f32 %v425, 0.0
          %v427 = vpack.c.bf16 %v426, %v426
          %v428 = vld [vmem:[%s288] sm:$0xf]
          %v429 = vld [vmem:[%s288 + $0x4] sm:$0xf]
          %v430 = vld [vmem:[%s288 + $0x8] sm:$0xf]
          %v431 = vld [vmem:[%s288 + $0xc] sm:$0xf]
          %v432 = vld [vmem:[%s288 + $0x10] sm:$0xf]
          %v433 = vld [vmem:[%s288 + $0x14] sm:$0xf]
          %v434 = vld [vmem:[%s288 + $0x18] sm:$0xf]
          %v435 = vld [vmem:[%s288 + $0x1c] sm:$0xf]
          %v436 = vld [vmem:[%s288 + $0x20] sm:$0xf]
          %v437 = vld [vmem:[%s288 + $0x24] sm:$0xf]
          %v438 = vld [vmem:[%s288 + $0x28] sm:$0xf]
          %v439 = vld [vmem:[%s288 + $0x2c] sm:$0xf]
          %v440 = vld [vmem:[%s288 + $0x30] sm:$0xf]
          %v441 = vld [vmem:[%s288 + $0x34] sm:$0xf]
          %v442 = vld [vmem:[%s288 + $0x38] sm:$0xf]
          %v443 = vld [vmem:[%s288 + $0x3c] sm:$0xf]
          %v460 = vunpack.c.l.b16 %v428
          %v461 = vunpack.c.l.b16 %v429
          %v462 = vunpack.c.l.b16 %v430
          %v463 = vunpack.c.l.b16 %v431
          %v464 = vunpack.c.l.b16 %v432
          %v465 = vunpack.c.l.b16 %v433
          %v466 = vunpack.c.l.b16 %v434
          %v467 = vunpack.c.l.b16 %v435
          %v468 = vunpack.c.l.b16 %v436
          %v469 = vunpack.c.l.b16 %v437
          %v470 = vunpack.c.l.b16 %v438
          %v471 = vunpack.c.l.b16 %v439
          %v472 = vunpack.c.l.b16 %v440
          %v473 = vunpack.c.l.b16 %v441
          %v474 = vunpack.c.l.b16 %v442
          %v475 = vunpack.c.l.b16 %v443
          %v476 = vpack.c.b16 %v461, %v460
          %v477 = vpack.c.b16 %v463, %v462
          %v478 = vpack.c.b16 %v465, %v464
          %v479 = vpack.c.b16 %v467, %v466
          %v480 = vpack.c.b16 %v469, %v468
          %v481 = vpack.c.b16 %v471, %v470
          %v482 = vpack.c.b16 %v473, %v472
          %v483 = vpack.c.b16 %v475, %v474
          %492 = vmatpush.bf16.msra.mxu0 %v483
          %493 = vmatpush.bf16.msra.mxu0 %v482
          %494 = vmatpush.bf16.msra.mxu0 %v481
          %495 = vmatpush.bf16.msra.mxu0 %v480
          %496 = vmatpush.bf16.msra.mxu0 %v479
          %497 = vmatpush.bf16.msra.mxu0 %v478
          %498 = vmatpush.bf16.msra.mxu0 %v477
          %499 = vmatpush.bf16.msra.mxu0 %v476
          %500 = vmatmul.bf16.gmra.mxu0 %v427
          %v501 = vpop.f32.mrf.mxu0
          %v502 = vadd.f32 0.0, %v501
          %v503 = vpop.f32.mrf.mxu0
          %504 = vdwg.mxu0
          %505 = vst [vmem:[%s322] sm:$0xff] %v502
        $region60: #{tpu_custom_call.1} parent=35 // pred_fallthru
          _
        %s506 = sand.u32 %s146, 1
        %s507 = scalar_lea.sflag [#allocation5], %s506
        %s508 = sand.u32 %s146, 1
        %s509 = smul.addr %s508, 8
        %s510 = scalar_lea.vmem [#allocation11], %s509
        // Predicated region
        $region61: #{tpu_custom_call.1} parent=35 // pred_check
          %p511 = pneg %p156
        $region62: #{tpu_custom_call.1} parent=35 // pred_check_branch
          %513 = sbr.rel (%p511) target = $region64
        $region63: #{tpu_custom_call.1} parent=35 // pred_region
          %515 = vsyncadd %s507, 0
          %s516 = smul.addr %s29, 8
          %s517 = scalar_lea.hbm %s4, %s516
          %s519 = sshll.u32 %s510, 4
          %s520 = int_to_ptr.vmem [resolvable:$true] %s519
          %s521 = sshll.u32 %s517, 4
          %s522 = int_to_ptr.hbm [resolvable:$true] %s521
          %524 = dma.vmem_to_hbm [thread:$0]  %s520, 128, %s522, %s507
        $region64: #{tpu_custom_call.1} parent=35 // pred_fallthru
          _
      $region36: #{tpu_custom_call.1} parent=5 // pred_fallthru
        _
      %p525 = scmp.le.s32.totalorder 2, %s20
      // Predicated region
      $region65: #{tpu_custom_call.1} parent=5 // pred_check
        %p526 = pneg %p525
      $region66: #{tpu_custom_call.1} parent=5 // pred_check_branch
        %528 = sbr.rel (%p526) target = $region68
      $region67: #{tpu_custom_call.1} parent=5 // pred_region
        %s529 = ssub.s32 %s20, 2
        // Predicated region
        $region69: #{tpu_custom_call.1} parent=67 // pred_check
          %p530 = pneg %p162
        $region70: #{tpu_custom_call.1} parent=67 // pred_check_branch
          %532 = sbr.rel (%p530) target = $region72
        $region71: #{tpu_custom_call.1} parent=67 // pred_region
          %s533 = sand.u32 %s147, 1
          %s534 = scalar_lea.sflag [#allocation5], %s533
          %s535 = sand.u32 %s147, 1
          %s536 = smul.addr %s535, 8
          %s537 = scalar_lea.vmem [#allocation11], %s536
          %539 = dma.done %s534, 128
        $region72: #{tpu_custom_call.1} parent=67 // pred_fallthru
          _
      $region68: #{tpu_custom_call.1} parent=5 // pred_fallthru
        _
    $region6: #{tpu_custom_call.1} parent=1 // loop_footer
      %s24 = sadd.s32 1, %s20
    $region7: #{tpu_custom_call.1} parent=1 // loop_footer_branch
      %19 = sbr.rel target = $region3
    $region8: #{tpu_custom_call.1} parent=1 // loop_exit
      _
    %540 = vsyncpa [#allocation4], 1
    %s541 = scalar_lea.sflag [#allocation4], 1
    %542 = vsyncpa %s541, 1
    %543 = vsyncpa [#allocation7], 1
    %s544 = scalar_lea.sflag [#allocation7], 1
    %545 = vsyncpa %s544, 1
    %546 = vsyncpa [#allocation10], 1
    %s547 = scalar_lea.sflag [#allocation10], 1
    %548 = vsyncpa %s547, 1
    %549 = vsyncpa [#allocation5], 1
    %s550 = scalar_lea.sflag [#allocation5], 1
    %551 = vsyncpa %s550, 1

</llo_original>
